<compile_context>
chip_gen: v7x
topology: tpu7x:2x2x1
jax: 0.10.0
libtpu: 0.0.40
codegen_flags: <defaults>
</compile_context>

<pallas_src>
import functools

import jax
import jax.numpy as jnp
from jax import lax
from jax.experimental import pallas as pl
from jax.experimental.pallas import tpu as pltpu


def _default_vmem_limit_bytes():
    """~5/8 of physical VMEM, capped at 64 MiB (64 MiB v5e/v6e, ~40 MiB v7x)."""
    try:
        cap = int(pltpu.get_tpu_info().vmem_capacity_bytes)
    except Exception:  # conservative fallback if the query is unavailable
        cap = 64 * 1024 * 1024
    return int(min(cap * 5 // 8, 64 * 1024 * 1024))


_VMEM_LIMIT = _default_vmem_limit_bytes()


def _pick_block_rows(m, k, c, vmem_limit):
    """Largest row tile whose double-buffered footprint fits the VMEM budget."""
    budget = vmem_limit // 2                      # headroom for weights / compiler scratch
    fixed = 2 * 4 * k * c                         # weight tile (counted double-buffered)
    tm = 8
    for cand in (4096, 2048, 1024, 512, 256, 128, 64, 32, 16, 8):
        if fixed + 2 * 4 * cand * (k + 2 * c) <= budget:
            tm = cand
            break
    m8 = ((m + 7) // 8) * 8                       # don't tile far past the problem size
    return max(8, min(tm, m8))


# ---------------------------------------------------------------------------
# Kernels (all refs only; no captured tracers / constants).
# ---------------------------------------------------------------------------
def _stats_kernel(p_ref, w_ref, sum_ref, sq_ref):
    """Pass 1 (shallow/fused path): MXU dot + per-tile channel sum / sum-sq."""
    y = jnp.dot(p_ref[...], w_ref[...], preferred_element_type=jnp.float32)
    s = jnp.sum(y, axis=0, keepdims=True)
    q = jnp.sum(y * y, axis=0, keepdims=True)
    # Stat blocks are (8, Cout) (sublane-aligned); replicate over the 8 rows,
    # the wrapper divides the reduced total by 8 (exact: power-of-two scale).
    sum_ref[...] = jnp.broadcast_to(s, sum_ref.shape)
    sq_ref[...] = jnp.broadcast_to(q, sq_ref.shape)


def _conv_stats_kernel(p_ref, w_ref, y_ref, sum_ref, sq_ref):
    """Pass 1 (deep path): MXU dot, store channel-narrow y, per-tile stats."""
    y = jnp.dot(p_ref[...], w_ref[...], preferred_element_type=jnp.float32)
    y_ref[...] = y
    s = jnp.sum(y, axis=0, keepdims=True)
    q = jnp.sum(y * y, axis=0, keepdims=True)
    sum_ref[...] = jnp.broadcast_to(s, sum_ref.shape)
    sq_ref[...] = jnp.broadcast_to(q, sq_ref.shape)


def _conv_bn_silu_kernel(p_ref, w_ref, scale_ref, shift_ref, o_ref):
    """Pass 2 (shallow/fused path): recompute dot, folded BN affine + SiLU."""
    y = jnp.dot(p_ref[...], w_ref[...], preferred_element_type=jnp.float32)
    z = y * scale_ref[...] + shift_ref[...]
    o_ref[...] = z * (1.0 / (1.0 + jnp.exp(-z)))   # exp on EUP; exact div for 1e-4


def _bn_silu_kernel(y_ref, scale_ref, shift_ref, o_ref):
    """Pass 2 (deep path): folded BN affine + SiLU, elementwise."""
    z = y_ref[...] * scale_ref[...] + shift_ref[...]
    o_ref[...] = z * (1.0 / (1.0 + jnp.exp(-z)))


# ---------------------------------------------------------------------------
# Wrapper.
# ---------------------------------------------------------------------------
@functools.partial(jax.jit,
                   static_argnames=("stride", "padding", "eps", "block_rows"))
def conv_bn_silu_nhwc(x, weight, bias, gamma, beta, *, stride=1, padding=0,
                      eps=1e-5, block_rows=None):
    """ConvBnSiLu forward. x: (N,H,W,Cin) NHWC; weight: (Cout,Cin,KH,KW)."""
    del bias  # a per-channel constant bias cancels exactly under batch-stat BN
    N, H, W, Cin = x.shape
    Cout, _, KH, KW = weight.shape
    Ho = (H + 2 * padding - KH) // stride + 1
    Wo = (W + 2 * padding - KW) // stride + 1
    M = N * Ho * Wo
    K = KH * KW * Cin

    x = x.astype(jnp.float32)
    xp = jnp.pad(x, ((0, 0), (padding, padding), (padding, padding), (0, 0)))

    # im2col. Identity (pure reshape) for 1x1 convs, which dominate this UNet.
    # TODO(synk): in-kernel patch gather (implicit GEMM) for the 3x3 init conv.
    if KH == 1 and KW == 1 and stride == 1:
        patches = xp.reshape(M, K)
    else:
        cols = []
        for kh in range(KH):
            for kw in range(KW):
                cols.append(xp[:, kh:kh + (Ho - 1) * stride + 1:stride,
                                  kw:kw + (Wo - 1) * stride + 1:stride, :])
        patches = jnp.concatenate(cols, axis=-1).reshape(M, K)

    # Weight (Cout,Cin,KH,KW) -> (KH*KW*Cin, Cout); channel-narrow (no lane pad).
    w_mat = jnp.transpose(weight.astype(jnp.float32), (2, 3, 1, 0)).reshape(K, Cout)
    g_row = gamma.astype(jnp.float32).reshape(1, Cout)
    be_row = beta.astype(jnp.float32).reshape(1, Cout)

    tm = (_pick_block_rows(M, K, Cout, _VMEM_LIMIT)
          if block_rows is None else int(block_rows))
    if tm % 8 != 0:
        raise ValueError(f"block_rows={tm} must be a multiple of 8")
    gm = pl.cdiv(M, tm)
    Mpad = gm * tm
    if Mpad != M:
        # Zero rows contribute exactly 0 to sum / sum-sq (no conv bias).
        patches = jnp.pad(patches, ((0, Mpad - M), (0, 0)))
    grid = (gm,)

    patch_spec = pl.BlockSpec((tm, K), lambda i: (i, 0))
    w_spec = pl.BlockSpec((K, Cout), lambda i: (0, 0))
    row_spec = pl.BlockSpec((1, Cout), lambda i: (0, 0))
    tile_spec = pl.BlockSpec((tm, Cout), lambda i: (i, 0))
    stat_spec = pl.BlockSpec((8, Cout), lambda i: (i, 0))
    stats_shape = jax.ShapeDtypeStruct((8 * gm, Cout), jnp.float32)
    parallel = pltpu.CompilerParams(dimension_semantics=("parallel",),
                                    vmem_limit_bytes=_VMEM_LIMIT)

    # Shallow layers: re-reading patches twice beats round-tripping y.
    fuse_recompute = K < 2 * Cout

    # ---- Pass 1: MXU dot + per-tile channel sum / sum-of-squares ----
    if fuse_recompute:
        part_sum, part_sq = pl.pallas_call(
            _stats_kernel,
            out_shape=(stats_shape, stats_shape),
            grid=grid,
            in_specs=[patch_spec, w_spec],
            out_specs=(stat_spec, stat_spec),
            compiler_params=parallel,
            cost_estimate=pl.CostEstimate(
                flops=2 * Mpad * K * Cout + 3 * Mpad * Cout,
                transcendentals=0,
                bytes_accessed=4 * (Mpad * K + K * Cout + 16 * gm * Cout)),
        )(patches, w_mat)
        y_flat = None
    else:
        # TODO(synk): bf16 y intermediate once tolerance is relaxed to ~1e-3.
        y_flat, part_sum, part_sq = pl.pallas_call(
            _conv_stats_kernel,
            out_shape=(jax.ShapeDtypeStruct((Mpad, Cout), jnp.float32),
                       stats_shape, stats_shape),
            grid=grid,
            in_specs=[patch_spec, w_spec],
            out_specs=(tile_spec, stat_spec, stat_spec),
            compiler_params=parallel,
            cost_estimate=pl.CostEstimate(
                flops=2 * Mpad * K * Cout + 3 * Mpad * Cout,
                transcendentals=0,
                bytes_accessed=4 * (Mpad * K + K * Cout + Mpad * Cout
                                    + 16 * gm * Cout)),
        )(patches, w_mat)

    # ---- Tiny (1, Cout) math in the wrapper: batch stats + affine fold ----
    m = jnp.float32(M)
    ch_sum = jnp.sum(part_sum, axis=0, keepdims=True) * 0.125   # /8 sublane copies
    ch_sq = jnp.sum(part_sq, axis=0, keepdims=True) * 0.125
    mean = ch_sum / m
    var = jnp.maximum(ch_sq / m - mean * mean, 0.0)             # biased batch var
    inv_std = lax.rsqrt(var + jnp.float32(eps))
    scale = g_row * inv_std
    shift = be_row - mean * scale

    # ---- Pass 2: folded BN affine + SiLU (channel-narrow output store) ----
    if fuse_recompute:
        out_flat = pl.pallas_call(
            _conv_bn_silu_kernel,
            out_shape=jax.ShapeDtypeStruct((Mpad, Cout), jnp.float32),
            grid=grid,
            in_specs=[patch_spec, w_spec, row_spec, row_spec],
            out_specs=tile_spec,
            compiler_params=parallel,
            cost_estimate=pl.CostEstimate(
                flops=2 * Mpad * K * Cout + 5 * Mpad * Cout,
                transcendentals=Mpad * Cout,
                bytes_accessed=4 * (Mpad * K + K * Cout + Mpad * Cout + 4 * Cout)),
        )(patches, w_mat, scale, shift)
    else:
        out_flat = pl.pallas_call(
            _bn_silu_kernel,
            out_shape=jax.ShapeDtypeStruct((Mpad, Cout), jnp.float32),
            grid=grid,
            in_specs=[tile_spec, row_spec, row_spec],
            out_specs=tile_spec,
            compiler_params=parallel,
            cost_estimate=pl.CostEstimate(
                flops=5 * Mpad * Cout,
                transcendentals=Mpad * Cout,
                bytes_accessed=4 * (2 * Mpad * Cout + 4 * Cout)),
            input_output_aliases={0: 0},    # reuse the y buffer; no extra HBM alloc
        )(y_flat, scale, shift)

    if Mpad != M:
        out_flat = out_flat[:M]
    return out_flat.reshape(N, Ho, Wo, Cout)


def conv_bn_silu(x_nchw, weight, bias, gamma, beta, *, stride=1, padding=0,
                 eps=1e-5, block_rows=None):
    """PyTorch-layout adapter: (N, Cin, H, W) in, (N, Cout, Ho, Wo) out."""
    x = jnp.transpose(x_nchw, (0, 2, 3, 1))
    out = conv_bn_silu_nhwc(x, weight, bias, gamma, beta, stride=stride,
                            padding=padding, eps=eps, block_rows=block_rows)
    return jnp.transpose(out, (0, 3, 1, 2))


def _reference(x_nchw, weight, bias, gamma, beta, *, stride, padding, eps):
    """Pure-JAX reference mirroring PyTorch Conv2d + BatchNorm2d(train) + SiLU."""
    y = lax.conv_general_dilated(
        x_nchw.astype(jnp.float32), weight.astype(jnp.float32),
        window_strides=(stride, stride),
        padding=[(padding, padding), (padding, padding)],
        dimension_numbers=("NCHW", "OIHW", "NCHW"))
    y = y + bias.reshape(1, -1, 1, 1)
    mean = jnp.mean(y, axis=(0, 2, 3), keepdims=True)
    var = jnp.mean((y - mean) ** 2, axis=(0, 2, 3), keepdims=True)
    z = (y - mean) * lax.rsqrt(var + eps) * gamma.reshape(1, -1, 1, 1) \
        + beta.reshape(1, -1, 1, 1)
    return z * jax.nn.sigmoid(z)


if __name__ == "__main__":
    def _run_case(name, key, *, N, H, W, cin, cout, ksize, stride, padding,
                  block_rows):
        kx, kw_, kb, kg, kbe = jax.random.split(key, 5)
        x = jax.random.normal(kx, (N, cin, H, W), dtype=jnp.float32)
        fan_in = cin * ksize * ksize
        weight = jax.random.normal(kw_, (cout, cin, ksize, ksize),
                                   dtype=jnp.float32) / jnp.sqrt(float(fan_in))
        bias = 0.05 * jax.random.normal(kb, (cout,), dtype=jnp.float32)
        gamma = 1.0 + 0.1 * jax.random.normal(kg, (cout,), dtype=jnp.float32)
        beta = 0.1 * jax.random.normal(kbe, (cout,), dtype=jnp.float32)

        out = conv_bn_silu(x, weight, bias, gamma, beta, stride=stride,
                           padding=padding, eps=1e-5, block_rows=block_rows)
        out = jax.block_until_ready(out)
        ref = _reference(x, weight, bias, gamma, beta,
                         stride=stride, padding=padding, eps=1e-5)
        Ho = (H + 2 * padding - ksize) // stride + 1
        Wo = (W + 2 * padding - ksize) // stride + 1
        assert out.shape == (N, cout, Ho, Wo), (name, out.shape)
        err = float(jnp.max(jnp.abs(out - ref)))
        assert jnp.allclose(out, ref, atol=1e-4, rtol=1e-4), (name, err)

    key = jax.random.PRNGKey(0)
    k1, k2 = jax.random.split(key)
    # init_conv-style 3x3 (K=36 >= 2*Cout): two-pass path (narrow y intermediate).
    # block_rows=128 with M=512 -> 4 grid steps: exercises per-tile stat partials.
    _run_case("conv3x3", k1, N=2, H=16, W=16, cin=4, cout=8,
              ksize=3, stride=1, padding=1, block_rows=128)
    # bottleneck-style 1x1 (K=32 < 2*Cout): fused recompute path, identity im2col.
    _run_case("conv1x1", k2, N=2, H=16, W=16, cin=32, cout=32,
              ksize=1, stride=1, padding=0, block_rows=128)
    print("KERNEL_OK")
</pallas_src>

<mosaic_0001>
module attributes {stable_mosaic.version = 11 : i64} {
  func.func @_conv_stats_kernel(%arg0: i32, %arg1: memref<128x36xf32, #tpu.memory_space<vmem>>, %arg2: memref<36x8xf32, #tpu.memory_space<vmem>>, %arg3: memref<128x8xf32, #tpu.memory_space<vmem>>, %arg4: memref<8x8xf32, #tpu.memory_space<vmem>>, %arg5: memref<8x8xf32, #tpu.memory_space<vmem>>) attributes {dimension_semantics = [#tpu.dimension_semantics<parallel>], iteration_bounds = array<i64: 4>, scalar_prefetch = 0 : i64, scratch_operands = 0 : i64, tpu.core_type = #tpu.core_type<tc>, window_params = [{transform_indices = @transform_0, window_bounds = array<i64: 128, 36>}, {pipeline_mode = #tpu.pipeline_mode<synchronous>, transform_indices = @transform_1, window_bounds = array<i64: 36, 8>}, {transform_indices = @transform_2, window_bounds = array<i64: 128, 8>}, {transform_indices = @transform_3, window_bounds = array<i64: 8, 8>}, {transform_indices = @transform_4, window_bounds = array<i64: 8, 8>}]} {
    %c0 = arith.constant 0 : index
    %c0_0 = arith.constant 0 : index
    %0 = vector.load %arg1[%c0, %c0_0] : memref<128x36xf32, #tpu.memory_space<vmem>>, vector<128x36xf32>
    %c0_1 = arith.constant 0 : index
    %c0_2 = arith.constant 0 : index
    %1 = vector.load %arg2[%c0_1, %c0_2] : memref<36x8xf32, #tpu.memory_space<vmem>>, vector<36x8xf32>
    %cst = arith.constant dense<0.000000e+00> : vector<128x8xf32>
    %2 = tpu.matmul %0, %1, %cst {dimension_numbers = #tpu.dot_dimension_numbers<[1], [0], [0], [1], [0, 0, 1, 1], [], []>} : vector<128x36xf32>, vector<36x8xf32>, vector<128x8xf32> -> vector<128x8xf32>
    %c0_3 = arith.constant 0 : index
    %c0_4 = arith.constant 0 : index
    %3 = vector.load %arg3[%c0_3, %c0_4] : memref<128x8xf32, #tpu.memory_space<vmem>>, vector<128x8xf32>
    tpu.vector_store %arg3[%c0_3, %c0_4], %2 {strides = array<i32>} : memref<128x8xf32, #tpu.memory_space<vmem>>, vector<128x8xf32>,
    %cst_5 = arith.constant dense<0.000000e+00> : vector<8xf32>
    %4 = vector.multi_reduction <add>, %2, %cst_5 [0] : vector<128x8xf32> to vector<8xf32>
    %5 = vector.shape_cast %4 : vector<8xf32> to vector<1x8xf32>
    %6 = arith.mulf %2, %2 : vector<128x8xf32>
    %cst_6 = arith.constant dense<0.000000e+00> : vector<8xf32>
    %7 = vector.multi_reduction <add>, %6, %cst_6 [0] : vector<128x8xf32> to vector<8xf32>
    %8 = vector.shape_cast %7 : vector<8xf32> to vector<1x8xf32>
    %9 = vector.shape_cast %5 : vector<1x8xf32> to vector<1x8xf32>
    %10 = vector.broadcast %9 : vector<1x8xf32> to vector<8x8xf32>
    %c0_7 = arith.constant 0 : index
    %c0_8 = arith.constant 0 : index
    %11 = vector.load %arg4[%c0_7, %c0_8] : memref<8x8xf32, #tpu.memory_space<vmem>>, vector<8x8xf32>
    tpu.vector_store %arg4[%c0_7, %c0_8], %10 {strides = array<i32>} : memref<8x8xf32, #tpu.memory_space<vmem>>, vector<8x8xf32>,
    %12 = vector.shape_cast %8 : vector<1x8xf32> to vector<1x8xf32>
    %13 = vector.broadcast %12 : vector<1x8xf32> to vector<8x8xf32>
    %c0_9 = arith.constant 0 : index
    %c0_10 = arith.constant 0 : index
    %14 = vector.load %arg5[%c0_9, %c0_10] : memref<8x8xf32, #tpu.memory_space<vmem>>, vector<8x8xf32>
    tpu.vector_store %arg5[%c0_9, %c0_10], %13 {strides = array<i32>} : memref<8x8xf32, #tpu.memory_space<vmem>>, vector<8x8xf32>,
    return
  }
  func.func @transform_0(%arg0: i32) -> (i32, i32) {
    %c0_i32 = arith.constant 0 : i32
    %c0_i32_0 = arith.constant 0 : i32
    return %arg0, %c0_i32 : i32, i32
  }
  func.func @transform_1(%arg0: i32) -> (i32, i32) {
    %c0_i32 = arith.constant 0 : i32
    %c0_i32_0 = arith.constant 0 : i32
    %c0_i32_1 = arith.constant 0 : i32
    return %c0_i32, %c0_i32_0 : i32, i32
  }
  func.func @transform_2(%arg0: i32) -> (i32, i32) {
    %c0_i32 = arith.constant 0 : i32
    %c0_i32_0 = arith.constant 0 : i32
    return %arg0, %c0_i32 : i32, i32
  }
  func.func @transform_3(%arg0: i32) -> (i32, i32) {
    %c0_i32 = arith.constant 0 : i32
    %c0_i32_0 = arith.constant 0 : i32
    return %arg0, %c0_i32 : i32, i32
  }
  func.func @transform_4(%arg0: i32) -> (i32, i32) {
    %c0_i32 = arith.constant 0 : i32
    %c0_i32_0 = arith.constant 0 : i32
    return %arg0, %c0_i32 : i32, i32
  }
}

module attributes {stable_mosaic.version = 11 : i64} {
  func.func @_bn_silu_kernel(%arg0: i32, %arg1: memref<128x8xf32, #tpu.memory_space<vmem>>, %arg2: memref<1x8xf32, #tpu.memory_space<vmem>>, %arg3: memref<1x8xf32, #tpu.memory_space<vmem>>, %arg4: memref<128x8xf32, #tpu.memory_space<vmem>>) attributes {dimension_semantics = [#tpu.dimension_semantics<parallel>], iteration_bounds = array<i64: 4>, scalar_prefetch = 0 : i64, scratch_operands = 0 : i64, tpu.core_type = #tpu.core_type<tc>, window_params = [{transform_indices = @transform_0, window_bounds = array<i64: 128, 8>}, {pipeline_mode = #tpu.pipeline_mode<synchronous>, transform_indices = @transform_1, window_bounds = array<i64: 1, 8>}, {pipeline_mode = #tpu.pipeline_mode<synchronous>, transform_indices = @transform_2, window_bounds = array<i64: 1, 8>}, {transform_indices = @transform_3, window_bounds = array<i64: 128, 8>}]} {
    %c0 = arith.constant 0 : index
    %c0_0 = arith.constant 0 : index
    %0 = vector.load %arg1[%c0, %c0_0] : memref<128x8xf32, #tpu.memory_space<vmem>>, vector<128x8xf32>
    %c0_1 = arith.constant 0 : index
    %c0_2 = arith.constant 0 : index
    %1 = vector.load %arg2[%c0_1, %c0_2] : memref<1x8xf32, #tpu.memory_space<vmem>>, vector<1x8xf32>
    %2 = vector.broadcast %1 : vector<1x8xf32> to vector<128x8xf32>
    %3 = arith.mulf %0, %2 : vector<128x8xf32>
    %c0_3 = arith.constant 0 : index
    %c0_4 = arith.constant 0 : index
    %4 = vector.load %arg3[%c0_3, %c0_4] : memref<1x8xf32, #tpu.memory_space<vmem>>, vector<1x8xf32>
    %5 = vector.broadcast %4 : vector<1x8xf32> to vector<128x8xf32>
    %6 = arith.addf %3, %5 : vector<128x8xf32>
    %cst = arith.constant 0.000000e+00 : f32
    %7 = vector.broadcast %cst : f32 to vector<128x8xf32>
    %8 = arith.subf %7, %6 : vector<128x8xf32>
    %9 = math.exp %8 : vector<128x8xf32>
    %cst_5 = arith.constant 1.000000e+00 : f32
    %10 = vector.broadcast %cst_5 : f32 to vector<128x8xf32>
    %11 = arith.addf %10, %9 : vector<128x8xf32>
    %cst_6 = arith.constant 1.000000e+00 : f32
    %12 = vector.broadcast %cst_6 : f32 to vector<128x8xf32>
    %13 = arith.divf %12, %11 : vector<128x8xf32>
    %14 = arith.mulf %6, %13 : vector<128x8xf32>
    %c0_7 = arith.constant 0 : index
    %c0_8 = arith.constant 0 : index
    %15 = vector.load %arg4[%c0_7, %c0_8] : memref<128x8xf32, #tpu.memory_space<vmem>>, vector<128x8xf32>
    tpu.vector_store %arg4[%c0_7, %c0_8], %14 {strides = array<i32>} : memref<128x8xf32, #tpu.memory_space<vmem>>, vector<128x8xf32>,
    return
  }
  func.func @transform_0(%arg0: i32) -> (i32, i32) {
    %c0_i32 = arith.constant 0 : i32
    %c0_i32_0 = arith.constant 0 : i32
    return %arg0, %c0_i32 : i32, i32
  }
  func.func @transform_1(%arg0: i32) -> (i32, i32) {
    %c0_i32 = arith.constant 0 : i32
    %c0_i32_0 = arith.constant 0 : i32
    %c0_i32_1 = arith.constant 0 : i32
    return %c0_i32, %c0_i32_0 : i32, i32
  }
  func.func @transform_2(%arg0: i32) -> (i32, i32) {
    %c0_i32 = arith.constant 0 : i32
    %c0_i32_0 = arith.constant 0 : i32
    %c0_i32_1 = arith.constant 0 : i32
    return %c0_i32, %c0_i32_0 : i32, i32
  }
  func.func @transform_3(%arg0: i32) -> (i32, i32) {
    %c0_i32 = arith.constant 0 : i32
    %c0_i32_0 = arith.constant 0 : i32
    return %arg0, %c0_i32 : i32, i32
  }
}

</mosaic_0001>

<llo_original>
// kernel: conv_bn_silu_nhwc.3
$region0: #{conv_bn_silu_nhwc.3}
  #allocation0 [shape = 'u32[]', space=smem, size = 0x4, offset = 0x4, fixed_abs, tag = 'smem constant byte address 0x4 - core index']
  #allocation1 [shape = 'u32[144,128]{1,0:T(1,128)}', space=vmem, size = 0x12000, scoped, tag = 'internal scratch']
  %s0 = inlined_call_operand.vmem [shape: f32[512,8], index: 0, kind: input, shape index: {}, may-alias: {0,3}]
  %s1 = inlined_call_operand.vmem [shape: f32[1,8], index: 1, kind: input, shape index: {}]
  %s2 = inlined_call_operand.vmem [shape: f32[1,8], index: 2, kind: input, shape index: {}]
  %s3 = inlined_call_operand.vmem [shape: f32[512,8], index: 3, kind: output, shape index: {}, may-alias: {0,3}]
  %s4 = sld [smem:[#allocation0]]
  $region45: #{conv_bn_silu_nhwc.3} parent=0
    _
  %s6 = ssub.s32 1, %s4
  %s7 = scalar_select 0, %s6, %s4
  loop: start=0, step=1, limit=6
  $region2: #{conv_bn_silu_nhwc.3} parent=0 // loop_pre_header
    _
  $region3: #{conv_bn_silu_nhwc.3} parent=0 // loop_header
    %s9 = sphi 0, %s13
    %p10 = scmp.ge.s32.totalorder %s9, 6
    %s19 = sphi 0, %s21
    %s22 = sphi 0, %s19
    %s23 = sphi 0, %s22
    %s39 = sphi 0, %s23
    %s43 = sphi 0, %s43
    %s45 = sphi 0, %s43
    %s46 = sphi 0, %s45
    %s60 = sphi 0, %s46
    %s64 = sphi 0, %s64
    %s66 = sphi 0, %s64
    %s67 = sphi 0, %s66
    %s81 = sphi 0, %s67
    %s87 = sphi 0, %s89
    %s90 = sphi 0, %s87
    %s91 = sphi 0, %s90
    %s107 = sphi 0, %s91
  $region4: #{conv_bn_silu_nhwc.3} parent=0 // loop_header_branch
    %12 = sbr.rel (%p10) target = $region8
  $region5: #{conv_bn_silu_nhwc.3} parent=0 // loop_body
    %s14 = ssub.s32 %s9, 1
    %s15 = ssub.s32 %s9, 2
    %s16 = sadd.s32 %s9, 1
    %s17 = ssub.s32 %s9, %s16
    %p18 = scmp.eq.s32.totalorder %s17, 0
    %s20 = sadd.s32 %s19, 1
    %s21 = scalar_select %p18, %s19, %s20
    %p24 = pneg %p18
    %p25 = scmp.eq.s32.totalorder %s9, 3
    %p26 = por %p24, %p25
    %p27 = scmp.ne.s32.totalorder %s19, %s22
    %p28 = scmp.eq.s32.totalorder %s9, 0
    %p29 = por %p27, %p28
    %p30 = scmp.ne.s32.totalorder %s19, %s22
    %p31 = scmp.eq.s32.totalorder %s14, 3
    %p32 = por %p30, %p31
    %p33 = scmp.ne.s32.totalorder %s22, %s23
    %p34 = scmp.eq.s32.totalorder %s14, 0
    %p35 = por %p33, %p34
    %p36 = scmp.ne.s32.totalorder %s22, %s23
    %p37 = scmp.eq.s32.totalorder %s15, 3
    %p38 = por %p36, %p37
    %p40 = scmp.ne.s32.totalorder %s23, %s39
    %p41 = scmp.eq.s32.totalorder %s15, 0
    %p42 = por %p40, %p41
    %s44 = sadd.s32 %s43, 1
    %p47 = scmp.eq.s32.totalorder %s9, 3
    %p48 = scmp.ne.s32.totalorder %s43, %s45
    %p49 = scmp.eq.s32.totalorder %s9, 0
    %p50 = por %p48, %p49
    %p51 = scmp.ne.s32.totalorder %s43, %s45
    %p52 = scmp.eq.s32.totalorder %s14, 3
    %p53 = por %p51, %p52
    %p54 = scmp.ne.s32.totalorder %s45, %s46
    %p55 = scmp.eq.s32.totalorder %s14, 0
    %p56 = por %p54, %p55
    %p57 = scmp.ne.s32.totalorder %s45, %s46
    %p58 = scmp.eq.s32.totalorder %s15, 3
    %p59 = por %p57, %p58
    %p61 = scmp.ne.s32.totalorder %s46, %s60
    %p62 = scmp.eq.s32.totalorder %s15, 0
    %p63 = por %p61, %p62
    %s65 = sadd.s32 %s64, 1
    %p68 = scmp.eq.s32.totalorder %s9, 3
    %p69 = scmp.ne.s32.totalorder %s64, %s66
    %p70 = scmp.eq.s32.totalorder %s9, 0
    %p71 = por %p69, %p70
    %p72 = scmp.ne.s32.totalorder %s64, %s66
    %p73 = scmp.eq.s32.totalorder %s14, 3
    %p74 = por %p72, %p73
    %p75 = scmp.ne.s32.totalorder %s66, %s67
    %p76 = scmp.eq.s32.totalorder %s14, 0
    %p77 = por %p75, %p76
    %p78 = scmp.ne.s32.totalorder %s66, %s67
    %p79 = scmp.eq.s32.totalorder %s15, 3
    %p80 = por %p78, %p79
    %p82 = scmp.ne.s32.totalorder %s67, %s81
    %p83 = scmp.eq.s32.totalorder %s15, 0
    %p84 = por %p82, %p83
    %s85 = ssub.s32 %s9, %s16
    %p86 = scmp.eq.s32.totalorder %s85, 0
    %s88 = sadd.s32 %s87, 1
    %s89 = scalar_select %p86, %s87, %s88
    %p92 = pneg %p86
    %p93 = scmp.eq.s32.totalorder %s9, 3
    %p94 = por %p92, %p93
    %p95 = scmp.ne.s32.totalorder %s87, %s90
    %p96 = scmp.eq.s32.totalorder %s9, 0
    %p97 = por %p95, %p96
    %p98 = scmp.ne.s32.totalorder %s87, %s90
    %p99 = scmp.eq.s32.totalorder %s14, 3
    %p100 = por %p98, %p99
    %p101 = scmp.ne.s32.totalorder %s90, %s91
    %p102 = scmp.eq.s32.totalorder %s14, 0
    %p103 = por %p101, %p102
    %p104 = scmp.ne.s32.totalorder %s90, %s91
    %p105 = scmp.eq.s32.totalorder %s15, 3
    %p106 = por %p104, %p105
    %p108 = scmp.ne.s32.totalorder %s91, %s107
    %p109 = scmp.eq.s32.totalorder %s15, 0
    %p110 = por %p108, %p109
    %p111 = scmp.le.s32.totalorder 1, %s9
    %p112 = scmp.lt.s32.totalorder %s9, 5
    %p113 = pnand %p111, %p112
    %p114 = pneg %p113
    // Predicated region
    $region9: #{conv_bn_silu_nhwc.3} parent=5 // pred_check
      _
    $region10: #{conv_bn_silu_nhwc.3} parent=5 // pred_check_branch
      %116 = sbr.rel (%p113) target = $region12
    $region11: #{conv_bn_silu_nhwc.3} parent=5 // pred_region
      %s117 = ssub.s32 %s9, 1
      // Predicated region
      $region13: #{conv_bn_silu_nhwc.3} parent=11 // pred_check
        %p118 = pneg %p56
      $region14: #{conv_bn_silu_nhwc.3} parent=11 // pred_check_branch
        %120 = sbr.rel (%p118) target = $region16
      $region15: #{conv_bn_silu_nhwc.3} parent=11 // pred_region
        _
      $region16: #{conv_bn_silu_nhwc.3} parent=11 // pred_fallthru
        _
      // Predicated region
      $region17: #{conv_bn_silu_nhwc.3} parent=11 // pred_check
        %p121 = pneg %p77
      $region18: #{conv_bn_silu_nhwc.3} parent=11 // pred_check_branch
        %123 = sbr.rel (%p121) target = $region20
      $region19: #{conv_bn_silu_nhwc.3} parent=11 // pred_region
        _
      $region20: #{conv_bn_silu_nhwc.3} parent=11 // pred_fallthru
        _
    $region12: #{conv_bn_silu_nhwc.3} parent=5 // pred_fallthru
      _
    %p124 = scmp.lt.s32.totalorder %s9, 4
    // Predicated region
    $region21: #{conv_bn_silu_nhwc.3} parent=5 // pred_check
      %p125 = pneg %p124
    $region22: #{conv_bn_silu_nhwc.3} parent=5 // pred_check_branch
      %127 = sbr.rel (%p125) target = $region24
    $region23: #{conv_bn_silu_nhwc.3} parent=5 // pred_region
      // Predicated region
      $region25: #{conv_bn_silu_nhwc.3} parent=23 // pred_check
        %p128 = pneg %p29
      $region26: #{conv_bn_silu_nhwc.3} parent=23 // pred_check_branch
        %130 = sbr.rel (%p128) target = $region28
      $region27: #{conv_bn_silu_nhwc.3} parent=23 // pred_region
        %s131 = smul.u32 16, %s9
        %p132 = scmp.lt.s32.totalorder %s131, 63
        %s133 = scalar_select %p132, %s131, 63
        %s134 = smul.addr %s133, 8
        %s135 = scalar_lea.vmem %s0, %s134
        %s136 = smul.u32 16, %s9
      $region28: #{conv_bn_silu_nhwc.3} parent=23 // pred_fallthru
        _
    $region24: #{conv_bn_silu_nhwc.3} parent=5 // pred_fallthru
      _
    %p137 = scmp.le.s32.totalorder 1, %s9
    %p138 = scmp.lt.s32.totalorder %s9, 5
    %p139 = pnand %p137, %p138
    %p140 = pneg %p139
    // Predicated region
    $region29: #{conv_bn_silu_nhwc.3} parent=5 // pred_check
      _
    $region30: #{conv_bn_silu_nhwc.3} parent=5 // pred_check_branch
      %142 = sbr.rel (%p139) target = $region32
    $region31: #{conv_bn_silu_nhwc.3} parent=5 // pred_region
      %s143 = ssub.s32 %s9, 1
      %s144 = smul.u32 16, %s14
      %p145 = scmp.lt.s32.totalorder %s144, 63
      %s146 = scalar_select %p145, %s144, 63
      %s147 = smul.addr %s146, 8
      %s148 = scalar_lea.vmem %s0, %s147
      %p149 = pneg %p35
      %p150 = pneg %p32
      %p151 = pneg %p56
      %p152 = pneg %p53
      %p153 = pneg %p77
      %p154 = pneg %p74
      %p155 = pneg %p103
      %p156 = pneg %p100
      %s157 = smul.u32 16, %s14
      %p158 = scmp.lt.s32.totalorder %s157, 63
      %s159 = scalar_select %p158, %s157, 63
      %s160 = smul.addr %s159, 8
      %s161 = scalar_lea.vmem %s3, %s160
      %s162 = smul.u32 16, %s14
      %p163 = scmp.lt.s32.totalorder %s162, 63
      %s164 = scalar_select %p163, %s162, 63
      %s165 = smul.addr %s164, 8
      %s166 = scalar_lea.vmem %s0, %s165
      %s167 = smul.u32 16, %s14
      %s168 = smul.u32 16, %s14
      %p169 = scmp.lt.s32.totalorder %s168, 63
      %s170 = scalar_select %p169, %s168, 63
      %s171 = smul.addr %s170, 8
      %s172 = scalar_lea.vmem %s3, %s171
      %s173 = smul.u32 16, %s14
      %v174 = vld [vmem:[%s166] sm:$0xff]
      %v175 = vld [vmem:[%s166 + $0x8] sm:$0xff]
      %v176 = vld [vmem:[%s166 + $0x10] sm:$0xff]
      %v177 = vld [vmem:[%s166 + $0x18] sm:$0xff]
      %v178 = vld [vmem:[%s166 + $0x20] sm:$0xff]
      %v179 = vld [vmem:[%s166 + $0x28] sm:$0xff]
      %v180 = vld [vmem:[%s166 + $0x30] sm:$0xff]
      %v181 = vld [vmem:[%s166 + $0x38] sm:$0xff]
      %v182 = vld [vmem:[%s166 + $0x40] sm:$0xff]
      %v183 = vld [vmem:[%s166 + $0x48] sm:$0xff]
      %v184 = vld [vmem:[%s166 + $0x50] sm:$0xff]
      %v185 = vld [vmem:[%s166 + $0x58] sm:$0xff]
      %v186 = vld [vmem:[%s166 + $0x60] sm:$0xff]
      %v187 = vld [vmem:[%s166 + $0x68] sm:$0xff]
      %v188 = vld [vmem:[%s166 + $0x70] sm:$0xff]
      %v189 = vld [vmem:[%s166 + $0x78] sm:$0xff]
      %v190 = vld [vmem:[%s1] sm:$0x1]
      %v192 = vlaneseq
      %v193 = vshrl.u32 %v192, 7
      %v194 = vsub.s32 0, %v193
      %v195 = vrot.slane %v190, %v194
      %v197 = vmul.f32 %v174, %v195
      %v198 = vmul.f32 %v175, %v195
      %v199 = vmul.f32 %v176, %v195
      %v200 = vmul.f32 %v177, %v195
      %v201 = vmul.f32 %v178, %v195
      %v202 = vmul.f32 %v179, %v195
      %v203 = vmul.f32 %v180, %v195
      %v204 = vmul.f32 %v181, %v195
      %v205 = vmul.f32 %v182, %v195
      %v206 = vmul.f32 %v183, %v195
      %v207 = vmul.f32 %v184, %v195
      %v208 = vmul.f32 %v185, %v195
      %v209 = vmul.f32 %v186, %v195
      %v210 = vmul.f32 %v187, %v195
      %v211 = vmul.f32 %v188, %v195
      %v212 = vmul.f32 %v189, %v195
      %v213 = vld [vmem:[%s2] sm:$0x1]
      %v215 = vlaneseq
      %v216 = vshrl.u32 %v215, 7
      %v217 = vsub.s32 0, %v216
      %v218 = vrot.slane %v213, %v217
      %v220 = vadd.f32 %v197, %v218
      %v221 = vadd.f32 %v198, %v218
      %v222 = vadd.f32 %v199, %v218
      %v223 = vadd.f32 %v200, %v218
      %v224 = vadd.f32 %v201, %v218
      %v225 = vadd.f32 %v202, %v218
      %v226 = vadd.f32 %v203, %v218
      %v227 = vadd.f32 %v204, %v218
      %v228 = vadd.f32 %v205, %v218
      %v229 = vadd.f32 %v206, %v218
      %v230 = vadd.f32 %v207, %v218
      %v231 = vadd.f32 %v208, %v218
      %v232 = vadd.f32 %v209, %v218
      %v233 = vadd.f32 %v210, %v218
      %v234 = vadd.f32 %v211, %v218
      %v235 = vadd.f32 %v212, %v218
      %v236 = vsub.f32 0.0, %v220
      %v237 = vsub.f32 0.0, %v221
      %v238 = vsub.f32 0.0, %v222
      %v239 = vsub.f32 0.0, %v223
      %v240 = vsub.f32 0.0, %v224
      %v241 = vsub.f32 0.0, %v225
      %v242 = vsub.f32 0.0, %v226
      %v243 = vsub.f32 0.0, %v227
      %v244 = vsub.f32 0.0, %v228
      %v245 = vsub.f32 0.0, %v229
      %v246 = vsub.f32 0.0, %v230
      %v247 = vsub.f32 0.0, %v231
      %v248 = vsub.f32 0.0, %v232
      %v249 = vsub.f32 0.0, %v233
      %v250 = vsub.f32 0.0, %v234
      %v251 = vsub.f32 0.0, %v235
      %v252 = vmul.f32 %v236, 1.442695
      %v253 = vpow.pop %v252
      %v254 = vmul.f32 %v237, 1.442695
      %v255 = vpow.pop %v254
      %v256 = vmul.f32 %v238, 1.442695
      %v257 = vpow.pop %v256
      %v258 = vmul.f32 %v239, 1.442695
      %v259 = vpow.pop %v258
      %v260 = vmul.f32 %v240, 1.442695
      %v261 = vpow.pop %v260
      %v262 = vmul.f32 %v241, 1.442695
      %v263 = vpow.pop %v262
      %v264 = vmul.f32 %v242, 1.442695
      %v265 = vpow.pop %v264
      %v266 = vmul.f32 %v243, 1.442695
      %v267 = vpow.pop %v266
      %v268 = vmul.f32 %v244, 1.442695
      %v269 = vpow.pop %v268
      %v270 = vmul.f32 %v245, 1.442695
      %v271 = vpow.pop %v270
      %v272 = vmul.f32 %v246, 1.442695
      %v273 = vpow.pop %v272
      %v274 = vmul.f32 %v247, 1.442695
      %v275 = vpow.pop %v274
      %v276 = vmul.f32 %v248, 1.442695
      %v277 = vpow.pop %v276
      %v278 = vmul.f32 %v249, 1.442695
      %v279 = vpow.pop %v278
      %v280 = vmul.f32 %v250, 1.442695
      %v281 = vpow.pop %v280
      %v282 = vmul.f32 %v251, 1.442695
      %v283 = vpow.pop %v282
      %v284 = vadd.f32 %v253, 1.0
      %v285 = vadd.f32 %v255, 1.0
      %v286 = vadd.f32 %v257, 1.0
      %v287 = vadd.f32 %v259, 1.0
      %v288 = vadd.f32 %v261, 1.0
      %v289 = vadd.f32 %v263, 1.0
      %v290 = vadd.f32 %v265, 1.0
      %v291 = vadd.f32 %v267, 1.0
      %v292 = vadd.f32 %v269, 1.0
      %v293 = vadd.f32 %v271, 1.0
      %v294 = vadd.f32 %v273, 1.0
      %v295 = vadd.f32 %v275, 1.0
      %v296 = vadd.f32 %v277, 1.0
      %v297 = vadd.f32 %v279, 1.0
      %v298 = vadd.f32 %v281, 1.0
      %v299 = vadd.f32 %v283, 1.0
      %v300 = vrcp.pop %v284
      %v301 = vmul.f32 1.0, %v300
      %v302 = vrcp.pop %v285
      %v303 = vmul.f32 1.0, %v302
      %v304 = vrcp.pop %v286
      %v305 = vmul.f32 1.0, %v304
      %v306 = vrcp.pop %v287
      %v307 = vmul.f32 1.0, %v306
      %v308 = vrcp.pop %v288
      %v309 = vmul.f32 1.0, %v308
      %v310 = vrcp.pop %v289
      %v311 = vmul.f32 1.0, %v310
      %v312 = vrcp.pop %v290
      %v313 = vmul.f32 1.0, %v312
      %v314 = vrcp.pop %v291
      %v315 = vmul.f32 1.0, %v314
      %v316 = vrcp.pop %v292
      %v317 = vmul.f32 1.0, %v316
      %v318 = vrcp.pop %v293
      %v319 = vmul.f32 1.0, %v318
      %v320 = vrcp.pop %v294
      %v321 = vmul.f32 1.0, %v320
      %v322 = vrcp.pop %v295
      %v323 = vmul.f32 1.0, %v322
      %v324 = vrcp.pop %v296
      %v325 = vmul.f32 1.0, %v324
      %v326 = vrcp.pop %v297
      %v327 = vmul.f32 1.0, %v326
      %v328 = vrcp.pop %v298
      %v329 = vmul.f32 1.0, %v328
      %v330 = vrcp.pop %v299
      %v331 = vmul.f32 1.0, %v330
      %v332 = vmul.f32 %v220, %v301
      %v333 = vmul.f32 %v221, %v303
      %v334 = vmul.f32 %v222, %v305
      %v335 = vmul.f32 %v223, %v307
      %v336 = vmul.f32 %v224, %v309
      %v337 = vmul.f32 %v225, %v311
      %v338 = vmul.f32 %v226, %v313
      %v339 = vmul.f32 %v227, %v315
      %v340 = vmul.f32 %v228, %v317
      %v341 = vmul.f32 %v229, %v319
      %v342 = vmul.f32 %v230, %v321
      %v343 = vmul.f32 %v231, %v323
      %v344 = vmul.f32 %v232, %v325
      %v345 = vmul.f32 %v233, %v327
      %v346 = vmul.f32 %v234, %v329
      %v347 = vmul.f32 %v235, %v331
      %vm348 = vcmask 64512
      %349 = vst.msk [vmem:[%s172] sm:$0xff] %vm348, %v332
      %350 = vst.msk [vmem:[%s172 + $0x8] sm:$0xff] %vm348, %v333
      %351 = vst.msk [vmem:[%s172 + $0x10] sm:$0xff] %vm348, %v334
      %352 = vst.msk [vmem:[%s172 + $0x18] sm:$0xff] %vm348, %v335
      %353 = vst.msk [vmem:[%s172 + $0x20] sm:$0xff] %vm348, %v336
      %354 = vst.msk [vmem:[%s172 + $0x28] sm:$0xff] %vm348, %v337
      %355 = vst.msk [vmem:[%s172 + $0x30] sm:$0xff] %vm348, %v338
      %356 = vst.msk [vmem:[%s172 + $0x38] sm:$0xff] %vm348, %v339
      %357 = vst.msk [vmem:[%s172 + $0x40] sm:$0xff] %vm348, %v340
      %358 = vst.msk [vmem:[%s172 + $0x48] sm:$0xff] %vm348, %v341
      %359 = vst.msk [vmem:[%s172 + $0x50] sm:$0xff] %vm348, %v342
      %360 = vst.msk [vmem:[%s172 + $0x58] sm:$0xff] %vm348, %v343
      %361 = vst.msk [vmem:[%s172 + $0x60] sm:$0xff] %vm348, %v344
      %362 = vst.msk [vmem:[%s172 + $0x68] sm:$0xff] %vm348, %v345
      %363 = vst.msk [vmem:[%s172 + $0x70] sm:$0xff] %vm348, %v346
      %364 = vst.msk [vmem:[%s172 + $0x78] sm:$0xff] %vm348, %v347
      %s365 = smul.u32 16, %s14
      %p366 = scmp.lt.s32.totalorder %s365, 63
      %s367 = scalar_select %p366, %s365, 63
      %s368 = smul.addr %s367, 8
      %s369 = scalar_lea.vmem %s3, %s368
      // Predicated region
      $region33: #{conv_bn_silu_nhwc.3} parent=31 // pred_check
        %p370 = pneg %p100
      $region34: #{conv_bn_silu_nhwc.3} parent=31 // pred_check_branch
        %372 = sbr.rel (%p370) target = $region36
      $region35: #{conv_bn_silu_nhwc.3} parent=31 // pred_region
        %s373 = smul.u32 16, %s14
      $region36: #{conv_bn_silu_nhwc.3} parent=31 // pred_fallthru
        _
    $region32: #{conv_bn_silu_nhwc.3} parent=5 // pred_fallthru
      _
    %p374 = scmp.le.s32.totalorder 2, %s9
    // Predicated region
    $region37: #{conv_bn_silu_nhwc.3} parent=5 // pred_check
      %p375 = pneg %p374
    $region38: #{conv_bn_silu_nhwc.3} parent=5 // pred_check_branch
      %377 = sbr.rel (%p375) target = $region40
    $region39: #{conv_bn_silu_nhwc.3} parent=5 // pred_region
      %s378 = ssub.s32 %s9, 2
      // Predicated region
      $region41: #{conv_bn_silu_nhwc.3} parent=39 // pred_check
        %p379 = pneg %p106
      $region42: #{conv_bn_silu_nhwc.3} parent=39 // pred_check_branch
        %381 = sbr.rel (%p379) target = $region44
      $region43: #{conv_bn_silu_nhwc.3} parent=39 // pred_region
        %s382 = smul.u32 16, %s15
        %p383 = scmp.lt.s32.totalorder %s382, 63
        %s384 = scalar_select %p383, %s382, 63
        %s385 = smul.addr %s384, 8
        %s386 = scalar_lea.vmem %s3, %s385
      $region44: #{conv_bn_silu_nhwc.3} parent=39 // pred_fallthru
        _
    $region40: #{conv_bn_silu_nhwc.3} parent=5 // pred_fallthru
      _
  $region6: #{conv_bn_silu_nhwc.3} parent=0 // loop_footer
    %s13 = sadd.s32 1, %s9
  $region7: #{conv_bn_silu_nhwc.3} parent=0 // loop_footer_branch
    %8 = sbr.rel target = $region3
  $region8: #{conv_bn_silu_nhwc.3} parent=0 // loop_exit
    _

// kernel: conv_bn_silu_nhwc.2
$region0: #{conv_bn_silu_nhwc.2}
  #allocation0 [shape = 'u32[]', space=smem, size = 0x4, offset = 0x4, fixed_abs, tag = 'smem constant byte address 0x4 - core index']
  #allocation1 [shape = 'u32[144,128]{1,0:T(1,128)}', space=vmem, size = 0x12000, scoped, tag = 'internal scratch']
  %s0 = inlined_call_operand.vmem [shape: f32[512,36], index: 0, kind: input, shape index: {}]
  %s1 = inlined_call_operand.vmem [shape: f32[36,8], index: 1, kind: input, shape index: {}]
  %s2 = inlined_call_operand.vmem [shape: f32[512,8], index: 2, kind: output, shape index: {0}]
  %s3 = inlined_call_operand.vmem [shape: f32[32,8], index: 3, kind: output, shape index: {1}]
  %s4 = inlined_call_operand.vmem [shape: f32[32,8], index: 4, kind: output, shape index: {2}]
  %5 = xla_tuple %s2, %s3, %s4
  %s6 = sld [smem:[#allocation0]]
  $region57: #{conv_bn_silu_nhwc.2} parent=0
    _
  %s8 = ssub.s32 1, %s6
  %s9 = scalar_select 0, %s8, %s6
  loop: start=0, step=1, limit=6
  $region2: #{conv_bn_silu_nhwc.2} parent=0 // loop_pre_header
    _
  $region3: #{conv_bn_silu_nhwc.2} parent=0 // loop_header
    %s11 = sphi 0, %s15
    %p12 = scmp.ge.s32.totalorder %s11, 6
    %s21 = sphi 0, %s23
    %s24 = sphi 0, %s21
    %s25 = sphi 0, %s24
    %s41 = sphi 0, %s25
    %s45 = sphi 0, %s45
    %s47 = sphi 0, %s45
    %s48 = sphi 0, %s47
    %s62 = sphi 0, %s48
    %s68 = sphi 0, %s70
    %s71 = sphi 0, %s68
    %s72 = sphi 0, %s71
    %s88 = sphi 0, %s72
    %s94 = sphi 0, %s96
    %s97 = sphi 0, %s94
    %s98 = sphi 0, %s97
    %s114 = sphi 0, %s98
    %s120 = sphi 0, %s122
    %s123 = sphi 0, %s120
    %s124 = sphi 0, %s123
    %s140 = sphi 0, %s124
  $region4: #{conv_bn_silu_nhwc.2} parent=0 // loop_header_branch
    %14 = sbr.rel (%p12) target = $region8
  $region5: #{conv_bn_silu_nhwc.2} parent=0 // loop_body
    %s16 = ssub.s32 %s11, 1
    %s17 = ssub.s32 %s11, 2
    %s18 = sadd.s32 %s11, 1
    %s19 = ssub.s32 %s11, %s18
    %p20 = scmp.eq.s32.totalorder %s19, 0
    %s22 = sadd.s32 %s21, 1
    %s23 = scalar_select %p20, %s21, %s22
    %p26 = pneg %p20
    %p27 = scmp.eq.s32.totalorder %s11, 3
    %p28 = por %p26, %p27
    %p29 = scmp.ne.s32.totalorder %s21, %s24
    %p30 = scmp.eq.s32.totalorder %s11, 0
    %p31 = por %p29, %p30
    %p32 = scmp.ne.s32.totalorder %s21, %s24
    %p33 = scmp.eq.s32.totalorder %s16, 3
    %p34 = por %p32, %p33
    %p35 = scmp.ne.s32.totalorder %s24, %s25
    %p36 = scmp.eq.s32.totalorder %s16, 0
    %p37 = por %p35, %p36
    %p38 = scmp.ne.s32.totalorder %s24, %s25
    %p39 = scmp.eq.s32.totalorder %s17, 3
    %p40 = por %p38, %p39
    %p42 = scmp.ne.s32.totalorder %s25, %s41
    %p43 = scmp.eq.s32.totalorder %s17, 0
    %p44 = por %p42, %p43
    %s46 = sadd.s32 %s45, 1
    %p49 = scmp.eq.s32.totalorder %s11, 3
    %p50 = scmp.ne.s32.totalorder %s45, %s47
    %p51 = scmp.eq.s32.totalorder %s11, 0
    %p52 = por %p50, %p51
    %p53 = scmp.ne.s32.totalorder %s45, %s47
    %p54 = scmp.eq.s32.totalorder %s16, 3
    %p55 = por %p53, %p54
    %p56 = scmp.ne.s32.totalorder %s47, %s48
    %p57 = scmp.eq.s32.totalorder %s16, 0
    %p58 = por %p56, %p57
    %p59 = scmp.ne.s32.totalorder %s47, %s48
    %p60 = scmp.eq.s32.totalorder %s17, 3
    %p61 = por %p59, %p60
    %p63 = scmp.ne.s32.totalorder %s48, %s62
    %p64 = scmp.eq.s32.totalorder %s17, 0
    %p65 = por %p63, %p64
    %s66 = ssub.s32 %s11, %s18
    %p67 = scmp.eq.s32.totalorder %s66, 0
    %s69 = sadd.s32 %s68, 1
    %s70 = scalar_select %p67, %s68, %s69
    %p73 = pneg %p67
    %p74 = scmp.eq.s32.totalorder %s11, 3
    %p75 = por %p73, %p74
    %p76 = scmp.ne.s32.totalorder %s68, %s71
    %p77 = scmp.eq.s32.totalorder %s11, 0
    %p78 = por %p76, %p77
    %p79 = scmp.ne.s32.totalorder %s68, %s71
    %p80 = scmp.eq.s32.totalorder %s16, 3
    %p81 = por %p79, %p80
    %p82 = scmp.ne.s32.totalorder %s71, %s72
    %p83 = scmp.eq.s32.totalorder %s16, 0
    %p84 = por %p82, %p83
    %p85 = scmp.ne.s32.totalorder %s71, %s72
    %p86 = scmp.eq.s32.totalorder %s17, 3
    %p87 = por %p85, %p86
    %p89 = scmp.ne.s32.totalorder %s72, %s88
    %p90 = scmp.eq.s32.totalorder %s17, 0
    %p91 = por %p89, %p90
    %s92 = ssub.s32 %s11, %s18
    %p93 = scmp.eq.s32.totalorder %s92, 0
    %s95 = sadd.s32 %s94, 1
    %s96 = scalar_select %p93, %s94, %s95
    %p99 = pneg %p93
    %p100 = scmp.eq.s32.totalorder %s11, 3
    %p101 = por %p99, %p100
    %p102 = scmp.ne.s32.totalorder %s94, %s97
    %p103 = scmp.eq.s32.totalorder %s11, 0
    %p104 = por %p102, %p103
    %p105 = scmp.ne.s32.totalorder %s94, %s97
    %p106 = scmp.eq.s32.totalorder %s16, 3
    %p107 = por %p105, %p106
    %p108 = scmp.ne.s32.totalorder %s97, %s98
    %p109 = scmp.eq.s32.totalorder %s16, 0
    %p110 = por %p108, %p109
    %p111 = scmp.ne.s32.totalorder %s97, %s98
    %p112 = scmp.eq.s32.totalorder %s17, 3
    %p113 = por %p111, %p112
    %p115 = scmp.ne.s32.totalorder %s98, %s114
    %p116 = scmp.eq.s32.totalorder %s17, 0
    %p117 = por %p115, %p116
    %s118 = ssub.s32 %s11, %s18
    %p119 = scmp.eq.s32.totalorder %s118, 0
    %s121 = sadd.s32 %s120, 1
    %s122 = scalar_select %p119, %s120, %s121
    %p125 = pneg %p119
    %p126 = scmp.eq.s32.totalorder %s11, 3
    %p127 = por %p125, %p126
    %p128 = scmp.ne.s32.totalorder %s120, %s123
    %p129 = scmp.eq.s32.totalorder %s11, 0
    %p130 = por %p128, %p129
    %p131 = scmp.ne.s32.totalorder %s120, %s123
    %p132 = scmp.eq.s32.totalorder %s16, 3
    %p133 = por %p131, %p132
    %p134 = scmp.ne.s32.totalorder %s123, %s124
    %p135 = scmp.eq.s32.totalorder %s16, 0
    %p136 = por %p134, %p135
    %p137 = scmp.ne.s32.totalorder %s123, %s124
    %p138 = scmp.eq.s32.totalorder %s17, 3
    %p139 = por %p137, %p138
    %p141 = scmp.ne.s32.totalorder %s124, %s140
    %p142 = scmp.eq.s32.totalorder %s17, 0
    %p143 = por %p141, %p142
    %p144 = scmp.le.s32.totalorder 1, %s11
    %p145 = scmp.lt.s32.totalorder %s11, 5
    %p146 = pnand %p144, %p145
    %p147 = pneg %p146
    // Predicated region
    $region9: #{conv_bn_silu_nhwc.2} parent=5 // pred_check
      _
    $region10: #{conv_bn_silu_nhwc.2} parent=5 // pred_check_branch
      %149 = sbr.rel (%p146) target = $region12
    $region11: #{conv_bn_silu_nhwc.2} parent=5 // pred_region
      %s150 = ssub.s32 %s11, 1
      // Predicated region
      $region13: #{conv_bn_silu_nhwc.2} parent=11 // pred_check
        %p151 = pneg %p58
      $region14: #{conv_bn_silu_nhwc.2} parent=11 // pred_check_branch
        %153 = sbr.rel (%p151) target = $region16
      $region15: #{conv_bn_silu_nhwc.2} parent=11 // pred_region
        _
      $region16: #{conv_bn_silu_nhwc.2} parent=11 // pred_fallthru
        _
    $region12: #{conv_bn_silu_nhwc.2} parent=5 // pred_fallthru
      _
    %p154 = scmp.lt.s32.totalorder %s11, 4
    // Predicated region
    $region17: #{conv_bn_silu_nhwc.2} parent=5 // pred_check
      %p155 = pneg %p154
    $region18: #{conv_bn_silu_nhwc.2} parent=5 // pred_check_branch
      %157 = sbr.rel (%p155) target = $region20
    $region19: #{conv_bn_silu_nhwc.2} parent=5 // pred_region
      // Predicated region
      $region21: #{conv_bn_silu_nhwc.2} parent=19 // pred_check
        %p158 = pneg %p31
      $region22: #{conv_bn_silu_nhwc.2} parent=19 // pred_check_branch
        %160 = sbr.rel (%p158) target = $region24
      $region23: #{conv_bn_silu_nhwc.2} parent=19 // pred_region
        %s161 = smul.u32 16, %s11
        %p162 = scmp.lt.s32.totalorder %s161, 63
        %s163 = scalar_select %p162, %s161, 63
        %s164 = smul.addr %s163, 8
        %s165 = scalar_lea.vmem %s0, %s164
        %s166 = smul.u32 16, %s11
      $region24: #{conv_bn_silu_nhwc.2} parent=19 // pred_fallthru
        _
    $region20: #{conv_bn_silu_nhwc.2} parent=5 // pred_fallthru
      _
    %p167 = scmp.le.s32.totalorder 1, %s11
    %p168 = scmp.lt.s32.totalorder %s11, 5
    %p169 = pnand %p167, %p168
    %p170 = pneg %p169
    // Predicated region
    $region25: #{conv_bn_silu_nhwc.2} parent=5 // pred_check
      _
    $region26: #{conv_bn_silu_nhwc.2} parent=5 // pred_check_branch
      %172 = sbr.rel (%p169) target = $region28
    $region27: #{conv_bn_silu_nhwc.2} parent=5 // pred_region
      %s173 = ssub.s32 %s11, 1
      %s174 = smul.u32 16, %s16
      %p175 = scmp.lt.s32.totalorder %s174, 63
      %s176 = scalar_select %p175, %s174, 63
      %s177 = smul.addr %s176, 8
      %s178 = scalar_lea.vmem %s0, %s177
      %p179 = pneg %p37
      %p180 = pneg %p34
      %p181 = pneg %p58
      %p182 = pneg %p55
      %p183 = pneg %p84
      %p184 = pneg %p81
      %s185 = smul.u32 16, %s16
      %p186 = scmp.lt.s32.totalorder %s185, 63
      %s187 = scalar_select %p186, %s185, 63
      %s188 = smul.addr %s187, 8
      %s189 = scalar_lea.vmem %s2, %s188
      %p190 = pneg %p110
      %p191 = pneg %p107
      %p192 = scmp.lt.s32.totalorder %s16, 3
      %s193 = scalar_select %p192, %s16, 3
      %s194 = smul.addr %s193, 8
      %s195 = scalar_lea.vmem %s3, %s194
      %p196 = pneg %p136
      %p197 = pneg %p133
      %p198 = scmp.lt.s32.totalorder %s16, 3
      %s199 = scalar_select %p198, %s16, 3
      %s200 = smul.addr %s199, 8
      %s201 = scalar_lea.vmem %s4, %s200
      %s202 = smul.u32 16, %s16
      %p203 = scmp.lt.s32.totalorder %s202, 63
      %s204 = scalar_select %p203, %s202, 63
      %s205 = smul.addr %s204, 8
      %s206 = scalar_lea.vmem %s0, %s205
      %s207 = smul.u32 16, %s16
      %s208 = smul.u32 16, %s16
      %p209 = scmp.lt.s32.totalorder %s208, 63
      %s210 = scalar_select %p209, %s208, 63
      %s211 = smul.addr %s210, 8
      %s212 = scalar_lea.vmem %s2, %s211
      %s213 = smul.u32 16, %s16
      %p214 = scmp.lt.s32.totalorder %s16, 3
      %s215 = scalar_select %p214, %s16, 3
      %s216 = smul.addr %s215, 8
      %s217 = scalar_lea.vmem %s3, %s216
      %p218 = scmp.lt.s32.totalorder %s16, 3
      %s219 = scalar_select %p218, %s16, 3
      %s220 = smul.addr %s219, 8
      %s221 = scalar_lea.vmem %s4, %s220
      %v222 = vld [vmem:[%s206] sm:$0xff]
      %v223 = vld [vmem:[%s206 + $0x8] sm:$0xff]
      %v224 = vld [vmem:[%s206 + $0x10] sm:$0xff]
      %v225 = vld [vmem:[%s206 + $0x18] sm:$0xff]
      %v226 = vld [vmem:[%s206 + $0x20] sm:$0xff]
      %v227 = vld [vmem:[%s206 + $0x28] sm:$0xff]
      %v228 = vld [vmem:[%s206 + $0x30] sm:$0xff]
      %v229 = vld [vmem:[%s206 + $0x38] sm:$0xff]
      %v230 = vld [vmem:[%s206 + $0x40] sm:$0xff]
      %v231 = vld [vmem:[%s206 + $0x48] sm:$0xff]
      %v232 = vld [vmem:[%s206 + $0x50] sm:$0xff]
      %v233 = vld [vmem:[%s206 + $0x58] sm:$0xff]
      %v234 = vld [vmem:[%s206 + $0x60] sm:$0xff]
      %v235 = vld [vmem:[%s206 + $0x68] sm:$0xff]
      %v236 = vld [vmem:[%s206 + $0x70] sm:$0xff]
      %v237 = vld [vmem:[%s206 + $0x78] sm:$0xff]
      %v238 = vld [vmem:[%s1] sm:$0xff]
      %v239 = vld [vmem:[%s1 + $0x8] sm:$0xff]
      %v240 = vld [vmem:[%s1 + $0x10] sm:$0xff]
      %v241 = vld [vmem:[%s1 + $0x18] sm:$0xff]
      %v242 = vld [vmem:[%s1 + $0x20] sm:$0xf]
      %vm243 = vcmask 293888
      %v245 = vsel %vm243, %v222, 0
      %v248 = vsel %vm243, %v223, 0
      %v251 = vsel %vm243, %v224, 0
      %v254 = vsel %vm243, %v225, 0
      %v257 = vsel %vm243, %v226, 0
      %v260 = vsel %vm243, %v227, 0
      %v263 = vsel %vm243, %v228, 0
      %v266 = vsel %vm243, %v229, 0
      %v269 = vsel %vm243, %v230, 0
      %v272 = vsel %vm243, %v231, 0
      %v275 = vsel %vm243, %v232, 0
      %v278 = vsel %vm243, %v233, 0
      %v281 = vsel %vm243, %v234, 0
      %v284 = vsel %vm243, %v235, 0
      %v287 = vsel %vm243, %v236, 0
      %v290 = vsel %vm243, %v237, 0
      %vm292 = vcmask 1043456
      %v294 = vsel %vm292, %v242, 0
      %296 = vmatprep.subr.mxu0 0.0
      %297 = vmatpush1.msra.mxu0 %v238
      %298 = vmatprep.subr.mxu0 0.0
      %299 = vmatpush1.msra.mxu0 %v239
      %300 = vmatprep.subr.mxu0 0.0
      %301 = vmatpush1.msra.mxu0 %v240
      %302 = vmatprep.subr.mxu0 0.0
      %303 = vmatpush1.msra.mxu0 %v241
      %304 = vmatprep.subr.mxu0 0.0
      %305 = vmatpush1.msra.mxu0 %v294
      %306 = vmatprep.subr.mxu0 0.0
      %307 = vmatpush1.msra.mxu0 0.0
      %308 = vmatprep.subr.mxu0 0.0
      %309 = vmatpush1.msra.mxu0 0.0
      %310 = vmatprep.subr.mxu0 0.0
      %311 = vmatpush1.msra.mxu0 0.0
      %312 = vmatprep.subr.mxu0 0.0
      %313 = vmatpush1.msra.mxu0 0.0
      %314 = vmatprep.subr.mxu0 0.0
      %315 = vmatpush1.msra.mxu0 0.0
      %316 = vmatprep.subr.mxu0 0.0
      %317 = vmatpush1.msra.mxu0 0.0
      %318 = vmatprep.subr.mxu0 0.0
      %319 = vmatpush1.msra.mxu0 0.0
      %320 = vmatprep.subr.mxu0 0.0
      %321 = vmatpush1.msra.mxu0 0.0
      %322 = vmatprep.subr.mxu0 0.0
      %323 = vmatpush1.msra.mxu0 0.0
      %324 = vmatprep.subr.mxu0 0.0
      %325 = vmatpush1.msra.mxu0 0.0
      %326 = vmatprep.subr.mxu0 0.0
      %327 = vmatpush1.msra.mxu0 0.0
      %328 = vmatprep.subr.mxu0 0.0
      %329 = vmatpush1.msra.mxu0 0.0
      %330 = vmatprep.subr.mxu0 0.0
      %331 = vmatpush1.msra.mxu0 0.0
      %332 = vmatprep.subr.mxu0 0.0
      %333 = vmatpush1.msra.mxu0 0.0
      %334 = vmatprep.subr.mxu0 0.0
      %335 = vmatpush1.msra.mxu0 0.0
      %336 = vmatprep.subr.mxu0 0.0
      %337 = vmatpush1.msra.mxu0 0.0
      %338 = vmatprep.subr.mxu0 0.0
      %339 = vmatpush1.msra.mxu0 0.0
      %340 = vmatprep.subr.mxu0 0.0
      %341 = vmatpush1.msra.mxu0 0.0
      %342 = vmatprep.subr.mxu0 0.0
      %343 = vmatpush1.msra.mxu0 0.0
      %344 = vmatprep.subr.mxu0 0.0
      %345 = vmatpush1.msra.mxu0 0.0
      %346 = vmatprep.subr.mxu0 0.0
      %347 = vmatpush1.msra.mxu0 0.0
      %348 = vmatprep.subr.mxu0 0.0
      %349 = vmatpush1.msra.mxu0 0.0
      %350 = vmatprep.subr.mxu0 0.0
      %351 = vmatpush1.msra.mxu0 0.0
      %352 = vmatprep.subr.mxu0 0.0
      %353 = vmatpush1.msra.mxu0 0.0
      %354 = vmatprep.subr.mxu0 0.0
      %355 = vmatpush1.msra.mxu0 0.0
      %356 = vmatprep.subr.mxu0 0.0
      %357 = vmatpush1.msra.mxu0 0.0
      %358 = vmatprep.subr.mxu0 0.0
      %359 = vmatpush1.msra.mxu0 0.0
      %360 = vmatprep.mubr.f32.mxu0 0.0
      %361 = vmatmul.mubr.f32.gmra.mrb[0].mxu0 %v245
      %v362 = vpop.f32.mrb[0].mxu0
      %v363 = vadd.f32 0.0, %v362
      %v364 = vpop.f32.mrb[0].mxu0
      %365 = vmatprep.mubr.f32.mxu0 0.0
      %366 = vmatmul.mubr.f32.gmra.mrb[0].mxu0 %v248
      %v367 = vpop.f32.mrb[0].mxu0
      %v368 = vadd.f32 0.0, %v367
      %v369 = vpop.f32.mrb[0].mxu0
      %370 = vmatprep.mubr.f32.mxu0 0.0
      %371 = vmatmul.mubr.f32.gmra.mrb[0].mxu0 %v251
      %v372 = vpop.f32.mrb[0].mxu0
      %v373 = vadd.f32 0.0, %v372
      %v374 = vpop.f32.mrb[0].mxu0
      %375 = vmatprep.mubr.f32.mxu0 0.0
      %376 = vmatmul.mubr.f32.gmra.mrb[0].mxu0 %v254
      %v377 = vpop.f32.mrb[0].mxu0
      %v378 = vadd.f32 0.0, %v377
      %v379 = vpop.f32.mrb[0].mxu0
      %380 = vmatprep.mubr.f32.mxu0 0.0
      %381 = vmatmul.mubr.f32.gmra.mrb[0].mxu0 %v257
      %v382 = vpop.f32.mrb[0].mxu0
      %v383 = vadd.f32 0.0, %v382
      %v384 = vpop.f32.mrb[0].mxu0
      %385 = vmatprep.mubr.f32.mxu0 0.0
      %386 = vmatmul.mubr.f32.gmra.mrb[0].mxu0 %v260
      %v387 = vpop.f32.mrb[0].mxu0
      %v388 = vadd.f32 0.0, %v387
      %v389 = vpop.f32.mrb[0].mxu0
      %390 = vmatprep.mubr.f32.mxu0 0.0
      %391 = vmatmul.mubr.f32.gmra.mrb[0].mxu0 %v263
      %v392 = vpop.f32.mrb[0].mxu0
      %v393 = vadd.f32 0.0, %v392
      %v394 = vpop.f32.mrb[0].mxu0
      %395 = vmatprep.mubr.f32.mxu0 0.0
      %396 = vmatmul.mubr.f32.gmra.mrb[0].mxu0 %v266
      %v397 = vpop.f32.mrb[0].mxu0
      %v398 = vadd.f32 0.0, %v397
      %v399 = vpop.f32.mrb[0].mxu0
      %400 = vmatprep.mubr.f32.mxu0 0.0
      %401 = vmatmul.mubr.f32.gmra.mrb[0].mxu0 %v269
      %v402 = vpop.f32.mrb[0].mxu0
      %v403 = vadd.f32 0.0, %v402
      %v404 = vpop.f32.mrb[0].mxu0
      %405 = vmatprep.mubr.f32.mxu0 0.0
      %406 = vmatmul.mubr.f32.gmra.mrb[0].mxu0 %v272
      %v407 = vpop.f32.mrb[0].mxu0
      %v408 = vadd.f32 0.0, %v407
      %v409 = vpop.f32.mrb[0].mxu0
      %410 = vmatprep.mubr.f32.mxu0 0.0
      %411 = vmatmul.mubr.f32.gmra.mrb[0].mxu0 %v275
      %v412 = vpop.f32.mrb[0].mxu0
      %v413 = vadd.f32 0.0, %v412
      %v414 = vpop.f32.mrb[0].mxu0
      %415 = vmatprep.mubr.f32.mxu0 0.0
      %416 = vmatmul.mubr.f32.gmra.mrb[0].mxu0 %v278
      %v417 = vpop.f32.mrb[0].mxu0
      %v418 = vadd.f32 0.0, %v417
      %v419 = vpop.f32.mrb[0].mxu0
      %420 = vmatprep.mubr.f32.mxu0 0.0
      %421 = vmatmul.mubr.f32.gmra.mrb[0].mxu0 %v281
      %v422 = vpop.f32.mrb[0].mxu0
      %v423 = vadd.f32 0.0, %v422
      %v424 = vpop.f32.mrb[0].mxu0
      %425 = vmatprep.mubr.f32.mxu0 0.0
      %426 = vmatmul.mubr.f32.gmra.mrb[0].mxu0 %v284
      %v427 = vpop.f32.mrb[0].mxu0
      %v428 = vadd.f32 0.0, %v427
      %v429 = vpop.f32.mrb[0].mxu0
      %430 = vmatprep.mubr.f32.mxu0 0.0
      %431 = vmatmul.mubr.f32.gmra.mrb[0].mxu0 %v287
      %v432 = vpop.f32.mrb[0].mxu0
      %v433 = vadd.f32 0.0, %v432
      %v434 = vpop.f32.mrb[0].mxu0
      %435 = vmatprep.mubr.f32.mxu0 0.0
      %436 = vmatmul.mubr.f32.gmra.mrb[0].mxu0 %v290
      %v437 = vpop.f32.mrb[0].mxu0
      %v438 = vadd.f32 0.0, %v437
      %v439 = vpop.f32.mrb[0].mxu0
      %440 = vdwg.mxu0
      %vm441 = vcmask 64512
      %442 = vst.msk [vmem:[%s212] sm:$0xff] %vm441, %v363
      %443 = vst.msk [vmem:[%s212 + $0x8] sm:$0xff] %vm441, %v368
      %444 = vst.msk [vmem:[%s212 + $0x10] sm:$0xff] %vm441, %v373
      %445 = vst.msk [vmem:[%s212 + $0x18] sm:$0xff] %vm441, %v378
      %446 = vst.msk [vmem:[%s212 + $0x20] sm:$0xff] %vm441, %v383
      %447 = vst.msk [vmem:[%s212 + $0x28] sm:$0xff] %vm441, %v388
      %448 = vst.msk [vmem:[%s212 + $0x30] sm:$0xff] %vm441, %v393
      %449 = vst.msk [vmem:[%s212 + $0x38] sm:$0xff] %vm441, %v398
      %450 = vst.msk [vmem:[%s212 + $0x40] sm:$0xff] %vm441, %v403
      %451 = vst.msk [vmem:[%s212 + $0x48] sm:$0xff] %vm441, %v408
      %452 = vst.msk [vmem:[%s212 + $0x50] sm:$0xff] %vm441, %v413
      %453 = vst.msk [vmem:[%s212 + $0x58] sm:$0xff] %vm441, %v418
      %454 = vst.msk [vmem:[%s212 + $0x60] sm:$0xff] %vm441, %v423
      %455 = vst.msk [vmem:[%s212 + $0x68] sm:$0xff] %vm441, %v428
      %456 = vst.msk [vmem:[%s212 + $0x70] sm:$0xff] %vm441, %v433
      %457 = vst.msk [vmem:[%s212 + $0x78] sm:$0xff] %vm441, %v438
      %v458 = vsel %vm441, %v363, 0.0
      %v459 = vsel %vm441, %v368, 0.0
      %v460 = vadd.f32 %v458, %v459
      %v461 = vsel %vm441, %v373, 0.0
      %v462 = vadd.f32 %v460, %v461
      %v463 = vsel %vm441, %v378, 0.0
      %v464 = vadd.f32 %v462, %v463
      %v465 = vsel %vm441, %v383, 0.0
      %v466 = vadd.f32 %v464, %v465
      %v467 = vsel %vm441, %v388, 0.0
      %v468 = vadd.f32 %v466, %v467
      %v469 = vsel %vm441, %v393, 0.0
      %v470 = vadd.f32 %v468, %v469
      %v471 = vsel %vm441, %v398, 0.0
      %v472 = vadd.f32 %v470, %v471
      %v473 = vsel %vm441, %v403, 0.0
      %v474 = vadd.f32 %v472, %v473
      %v475 = vsel %vm441, %v408, 0.0
      %v476 = vadd.f32 %v474, %v475
      %v477 = vsel %vm441, %v413, 0.0
      %v478 = vadd.f32 %v476, %v477
      %v479 = vsel %vm441, %v418, 0.0
      %v480 = vadd.f32 %v478, %v479
      %v481 = vsel %vm441, %v423, 0.0
      %v482 = vadd.f32 %v480, %v481
      %v483 = vsel %vm441, %v428, 0.0
      %v484 = vadd.f32 %v482, %v483
      %v485 = vsel %vm441, %v433, 0.0
      %v486 = vadd.f32 %v484, %v485
      %v487 = vsel %vm441, %v438, 0.0
      %v488 = vadd.f32 %v486, %v487
      %v489 = vrot.slane %v488, 4
      %v490 = vadd.f32 %v488, %v489
      %v491 = vrot.slane %v490, 2
      %v492 = vadd.f32 %v490, %v491
      %v493 = vrot.slane %v492, 1
      %v494 = vadd.f32 %v492, %v493
      %v495 = vmul.f32 %v363, %v363
      %v496 = vmul.f32 %v368, %v368
      %v497 = vmul.f32 %v373, %v373
      %v498 = vmul.f32 %v378, %v378
      %v499 = vmul.f32 %v383, %v383
      %v500 = vmul.f32 %v388, %v388
      %v501 = vmul.f32 %v393, %v393
      %v502 = vmul.f32 %v398, %v398
      %v503 = vmul.f32 %v403, %v403
      %v504 = vmul.f32 %v408, %v408
      %v505 = vmul.f32 %v413, %v413
      %v506 = vmul.f32 %v418, %v418
      %v507 = vmul.f32 %v423, %v423
      %v508 = vmul.f32 %v428, %v428
      %v509 = vmul.f32 %v433, %v433
      %v510 = vmul.f32 %v438, %v438
      %v511 = vsel %vm441, %v495, 0.0
      %v512 = vsel %vm441, %v496, 0.0
      %v513 = vadd.f32 %v511, %v512
      %v514 = vsel %vm441, %v497, 0.0
      %v515 = vadd.f32 %v513, %v514
      %v516 = vsel %vm441, %v498, 0.0
      %v517 = vadd.f32 %v515, %v516
      %v518 = vsel %vm441, %v499, 0.0
      %v519 = vadd.f32 %v517, %v518
      %v520 = vsel %vm441, %v500, 0.0
      %v521 = vadd.f32 %v519, %v520
      %v522 = vsel %vm441, %v501, 0.0
      %v523 = vadd.f32 %v521, %v522
      %v524 = vsel %vm441, %v502, 0.0
      %v525 = vadd.f32 %v523, %v524
      %v526 = vsel %vm441, %v503, 0.0
      %v527 = vadd.f32 %v525, %v526
      %v528 = vsel %vm441, %v504, 0.0
      %v529 = vadd.f32 %v527, %v528
      %v530 = vsel %vm441, %v505, 0.0
      %v531 = vadd.f32 %v529, %v530
      %v532 = vsel %vm441, %v506, 0.0
      %v533 = vadd.f32 %v531, %v532
      %v534 = vsel %vm441, %v507, 0.0
      %v535 = vadd.f32 %v533, %v534
      %v536 = vsel %vm441, %v508, 0.0
      %v537 = vadd.f32 %v535, %v536
      %v538 = vsel %vm441, %v509, 0.0
      %v539 = vadd.f32 %v537, %v538
      %v540 = vsel %vm441, %v510, 0.0
      %v541 = vadd.f32 %v539, %v540
      %v542 = vrot.slane %v541, 4
      %v543 = vadd.f32 %v541, %v542
      %v544 = vrot.slane %v543, 2
      %v545 = vadd.f32 %v543, %v544
      %v546 = vrot.slane %v545, 1
      %v547 = vadd.f32 %v545, %v546
      %548 = vst.msk [vmem:[%s217] sm:$0xff] %vm441, %v494
      %549 = vst.msk [vmem:[%s221] sm:$0xff] %vm441, %v547
      %s550 = smul.u32 16, %s16
      %p551 = scmp.lt.s32.totalorder %s550, 63
      %s552 = scalar_select %p551, %s550, 63
      %s553 = smul.addr %s552, 8
      %s554 = scalar_lea.vmem %s2, %s553
      %p555 = scmp.lt.s32.totalorder %s16, 3
      %s556 = scalar_select %p555, %s16, 3
      %s557 = smul.addr %s556, 8
      %s558 = scalar_lea.vmem %s3, %s557
      %p559 = scmp.lt.s32.totalorder %s16, 3
      %s560 = scalar_select %p559, %s16, 3
      %s561 = smul.addr %s560, 8
      %s562 = scalar_lea.vmem %s4, %s561
      // Predicated region
      $region29: #{conv_bn_silu_nhwc.2} parent=27 // pred_check
        %p563 = pneg %p81
      $region30: #{conv_bn_silu_nhwc.2} parent=27 // pred_check_branch
        %565 = sbr.rel (%p563) target = $region32
      $region31: #{conv_bn_silu_nhwc.2} parent=27 // pred_region
        %s566 = smul.u32 16, %s16
      $region32: #{conv_bn_silu_nhwc.2} parent=27 // pred_fallthru
        _
      // Predicated region
      $region33: #{conv_bn_silu_nhwc.2} parent=27 // pred_check
        %p567 = pneg %p107
      $region34: #{conv_bn_silu_nhwc.2} parent=27 // pred_check_branch
        %569 = sbr.rel (%p567) target = $region36
      $region35: #{conv_bn_silu_nhwc.2} parent=27 // pred_region
        _
      $region36: #{conv_bn_silu_nhwc.2} parent=27 // pred_fallthru
        _
      // Predicated region
      $region37: #{conv_bn_silu_nhwc.2} parent=27 // pred_check
        %p570 = pneg %p133
      $region38: #{conv_bn_silu_nhwc.2} parent=27 // pred_check_branch
        %572 = sbr.rel (%p570) target = $region40
      $region39: #{conv_bn_silu_nhwc.2} parent=27 // pred_region
        _
      $region40: #{conv_bn_silu_nhwc.2} parent=27 // pred_fallthru
        _
    $region28: #{conv_bn_silu_nhwc.2} parent=5 // pred_fallthru
      _
    %p573 = scmp.le.s32.totalorder 2, %s11
    // Predicated region
    $region41: #{conv_bn_silu_nhwc.2} parent=5 // pred_check
      %p574 = pneg %p573
    $region42: #{conv_bn_silu_nhwc.2} parent=5 // pred_check_branch
      %576 = sbr.rel (%p574) target = $region44
    $region43: #{conv_bn_silu_nhwc.2} parent=5 // pred_region
      %s577 = ssub.s32 %s11, 2
      // Predicated region
      $region45: #{conv_bn_silu_nhwc.2} parent=43 // pred_check
        %p578 = pneg %p87
      $region46: #{conv_bn_silu_nhwc.2} parent=43 // pred_check_branch
        %580 = sbr.rel (%p578) target = $region48
      $region47: #{conv_bn_silu_nhwc.2} parent=43 // pred_region
        %s581 = smul.u32 16, %s17
        %p582 = scmp.lt.s32.totalorder %s581, 63
        %s583 = scalar_select %p582, %s581, 63
        %s584 = smul.addr %s583, 8
        %s585 = scalar_lea.vmem %s2, %s584
      $region48: #{conv_bn_silu_nhwc.2} parent=43 // pred_fallthru
        _
      // Predicated region
      $region49: #{conv_bn_silu_nhwc.2} parent=43 // pred_check
        %p586 = pneg %p113
      $region50: #{conv_bn_silu_nhwc.2} parent=43 // pred_check_branch
        %588 = sbr.rel (%p586) target = $region52
      $region51: #{conv_bn_silu_nhwc.2} parent=43 // pred_region
        %p589 = scmp.lt.s32.totalorder %s17, 3
        %s590 = scalar_select %p589, %s17, 3
        %s591 = smul.addr %s590, 8
        %s592 = scalar_lea.vmem %s3, %s591
      $region52: #{conv_bn_silu_nhwc.2} parent=43 // pred_fallthru
        _
      // Predicated region
      $region53: #{conv_bn_silu_nhwc.2} parent=43 // pred_check
        %p593 = pneg %p139
      $region54: #{conv_bn_silu_nhwc.2} parent=43 // pred_check_branch
        %595 = sbr.rel (%p593) target = $region56
      $region55: #{conv_bn_silu_nhwc.2} parent=43 // pred_region
        %p596 = scmp.lt.s32.totalorder %s17, 3
        %s597 = scalar_select %p596, %s17, 3
        %s598 = smul.addr %s597, 8
        %s599 = scalar_lea.vmem %s4, %s598
      $region56: #{conv_bn_silu_nhwc.2} parent=43 // pred_fallthru
        _
    $region44: #{conv_bn_silu_nhwc.2} parent=5 // pred_fallthru
      _
  $region6: #{conv_bn_silu_nhwc.2} parent=0 // loop_footer
    %s15 = sadd.s32 1, %s11
  $region7: #{conv_bn_silu_nhwc.2} parent=0 // loop_footer_branch
    %10 = sbr.rel target = $region3
  $region8: #{conv_bn_silu_nhwc.2} parent=0 // loop_exit
    _

</llo_original>
